<compile_context>
chip_gen: v5e
topology: v5e:2x2
jax: 0.10.0
libtpu: 0.0.40
codegen_flags: <defaults>
</compile_context>

<pallas_src>
import jax
import jax.numpy as jnp
from jax.experimental import pallas as pl
from jax.experimental.pallas import tpu as pltpu

_LANES = 128


def chi_embedding_kernel(chi_ref, w1_ref, b1_ref, w2_ref, b2_ref, o_ref):
    chi = chi_ref[...]                                     # (1, TILE_B)
    reps = chi.shape[1] // _LANES
    # Params arrive pre-broadcast to (E, 128): widening to (E, TILE_B) is
    # full-vreg replication, not a per-step single-lane broadcast.
    w1 = jnp.tile(w1_ref[...], (1, reps))                  # (E, TILE_B)
    b1 = jnp.tile(b1_ref[...], (1, reps))
    b2 = jnp.tile(b2_ref[...], (1, reps))
    # Layer 1: Linear(1, E) + ReLU as a VPU FMA (K = 1, no >99%-padded MXU pass).
    h1 = jnp.maximum(w1 * chi + b1, 0.0)                   # (E, TILE_B)
    # Layer 2: Linear(E, E) + ReLU -- the only matmul worth an MXU pass.
    h2 = jnp.dot(w2_ref[...], h1,
                 preferred_element_type=jnp.float32,
                 precision=jax.lax.Precision.HIGHEST)
    o_ref[...] = jnp.maximum(h2 + b2, 0.0)                 # (E, TILE_B)


def _round_up(x, m):
    return ((x + m - 1) // m) * m


def chi_embedding_pallas(chi, params, *, tile_b=65536, batch_major=True):
    """chi: (B, 1) float32.  params: (w1 (E,1), b1 (E,1), w2 (E,E), b2 (E,1)).

    tile_b: batch lanes per grid step (multiple of 128).  The kernel is
    HBM-bound, so big tiles amortize the ~0.35 us per-step overhead; it is
    clamped so that (a) it never exceeds the (lane-rounded) batch and
    (b) the grid keeps >= 2 steps when B > 128 so v7x's two TensorCores
    (split via the "parallel" grid axis) both get work.

    batch_major=True returns the PyTorch (B, E) layout (extra transpose);
    batch_major=False returns the lane-dense (E, B) activation -- prefer that
    for fused consumers and fold the transpose into their weights.
    """
    w1, b1, w2, b2 = params
    E = w1.shape[0]
    B = chi.shape[0]

    # Batch on the lane axis: (B,1) -> (1,B) is order-preserving (free reshape).
    chi_t = chi.reshape(1, B).astype(jnp.float32)

    # Pre-broadcast the column params to lane-dense (E, 128) once (trace time).
    w1b = jnp.broadcast_to(jnp.asarray(w1, jnp.float32).reshape(E, 1), (E, _LANES))
    b1b = jnp.broadcast_to(jnp.asarray(b1, jnp.float32).reshape(E, 1), (E, _LANES))
    b2b = jnp.broadcast_to(jnp.asarray(b2, jnp.float32).reshape(E, 1), (E, _LANES))
    w2f = jnp.asarray(w2, jnp.float32)

    # Tile selection.
    tile_b = max(_LANES, _round_up(int(tile_b), _LANES))
    if B > _LANES:
        # Keep >= 2 grid steps so the "parallel" axis can split across v7x TCs.
        tile_b = min(tile_b, _round_up(pl.cdiv(B, 2), _LANES))
    tile_b = min(tile_b, _round_up(B, _LANES))
    grid_b = pl.cdiv(B, tile_b)
    # No jnp.pad of chi: a partial final tile is handled by Pallas's masked
    # edge-block DMA; per-lane-independent math keeps padded lanes harmless.

    resident = lambda i: (0, 0)                  # weights pinned across the grid
    big_w2 = E * E * 4 >= (8 << 20)              # only matters for large embed_dim

    def resident_spec(shape):
        if big_w2:
            # Constant index_map -> no need to double-buffer the pinned params.
            return pl.BlockSpec(shape, resident, pipeline_mode=pl.Buffered(1))
        return pl.BlockSpec(shape, resident)

    cost = pl.CostEstimate(
        flops=2 * E * E * B + 6 * E * B,
        transcendentals=0,
        bytes_accessed=4 * B + 4 * E * B + 4 * (3 * E * _LANES + E * E),
    )

    n_wbuf = 1 if big_w2 else 2
    vmem_est = (2 * 8 * tile_b * 4                      # chi blocks (sublane-padded)
                + 2 * max(E, 8) * tile_b * 4            # output blocks
                + n_wbuf * 4 * (3 * E * _LANES + E * E))  # resident params
    cp_kwargs = dict(dimension_semantics=("parallel",))   # megacore on v7x
    if vmem_est > (30 << 20):
        cp_kwargs["vmem_limit_bytes"] = min(int(vmem_est * 1.25), 64 << 20)

    out_t = pl.pallas_call(
        chi_embedding_kernel,
        out_shape=jax.ShapeDtypeStruct((E, B), jnp.float32),
        grid=(grid_b,),
        in_specs=[
            pl.BlockSpec((1, tile_b), lambda i: (0, i)),   # chi tile (lane-dense)
            resident_spec((E, _LANES)),                    # w1 (pre-broadcast)
            resident_spec((E, _LANES)),                    # b1
            resident_spec((E, E)),                         # w2
            resident_spec((E, _LANES)),                    # b2
        ],
        out_specs=pl.BlockSpec((E, tile_b), lambda i: (0, i)),
        compiler_params=pltpu.CompilerParams(**cp_kwargs),
        cost_estimate=cost,
    )(chi_t, w1b, b1b, w2f, b2b)

    if batch_major:
        # PyTorch layout (B, E).  For fused consumers prefer batch_major=False
        # (lane-dense (E, B)) and fold the transpose into the consumer instead.
        return out_t.T
    return out_t


def init_params(key, embed_dim=8):
    """torch.nn.Linear default init (U(-1/sqrt(fan_in), +bound)), stored in
    (out_features, in_features) layout with (out_features, 1) bias columns."""
    def linear(key, fan_in, fan_out):
        kw, kb = jax.random.split(key)
        bound = 1.0 / jnp.sqrt(jnp.float32(fan_in))
        w = jax.random.uniform(kw, (fan_out, fan_in), jnp.float32, -bound, bound)
        b = jax.random.uniform(kb, (fan_out, 1), jnp.float32, -bound, bound)
        return w, b

    k1, k2 = jax.random.split(key)
    w1, b1 = linear(k1, 1, embed_dim)
    w2, b2 = linear(k2, embed_dim, embed_dim)
    return w1, b1, w2, b2


def _ref_forward(chi, params):
    # Pure-JAX reference matching the PyTorch module.
    w1, b1, w2, b2 = params
    x = chi.astype(jnp.float32)                        # (B, 1)
    h1 = jnp.maximum(x @ w1.T + b1.T, 0.0)             # (B, E)
    return jnp.maximum(h1 @ w2.T + b2.T, 0.0)          # (B, E)


if __name__ == "__main__":
    key = jax.random.PRNGKey(0)
    kp, kc = jax.random.split(key)

    embed_dim = 8
    params = init_params(kp, embed_dim)

    # Small batch (single, partial tile).
    B = 8
    chi = jax.random.normal(kc, (B, 1), jnp.float32)
    out = chi_embedding_pallas(chi, params)
    jax.block_until_ready(out)
    ref = _ref_forward(chi, params)
    assert out.shape == (B, embed_dim)
    assert jnp.allclose(out, ref, atol=1e-5, rtol=1e-5)

    # Multi-step grid with a partial final tile (exercises the no-pad path
    # and the >=2-grid-step clamp).
    B2 = 300
    chi2 = jax.random.normal(jax.random.PRNGKey(1), (B2, 1), jnp.float32)
    out2 = chi_embedding_pallas(chi2, params)
    jax.block_until_ready(out2)
    ref2 = _ref_forward(chi2, params)
    assert out2.shape == (B2, embed_dim)
    assert jnp.allclose(out2, ref2, atol=1e-5, rtol=1e-5)

    print("KERNEL_OK")
</pallas_src>

<mosaic_0001>
module attributes {stable_mosaic.version = 11 : i64} {
  func.func @chi_embedding_kernel(%arg0: i32, %arg1: memref<1x128xf32, #tpu.memory_space<vmem>>, %arg2: memref<8x128xf32, #tpu.memory_space<vmem>>, %arg3: memref<8x128xf32, #tpu.memory_space<vmem>>, %arg4: memref<8x8xf32, #tpu.memory_space<vmem>>, %arg5: memref<8x128xf32, #tpu.memory_space<vmem>>, %arg6: memref<8x128xf32, #tpu.memory_space<vmem>>) attributes {dimension_semantics = [#tpu.dimension_semantics<parallel>], iteration_bounds = array<i64: 1>, scalar_prefetch = 0 : i64, scratch_operands = 0 : i64, tpu.core_type = #tpu.core_type<tc>, window_params = [{transform_indices = @transform_0, window_bounds = array<i64: 1, 128>}, {pipeline_mode = #tpu.pipeline_mode<synchronous>, transform_indices = @transform_1, window_bounds = array<i64: 8, 128>}, {pipeline_mode = #tpu.pipeline_mode<synchronous>, transform_indices = @transform_2, window_bounds = array<i64: 8, 128>}, {pipeline_mode = #tpu.pipeline_mode<synchronous>, transform_indices = @transform_3, window_bounds = array<i64: 8, 8>}, {pipeline_mode = #tpu.pipeline_mode<synchronous>, transform_indices = @transform_4, window_bounds = array<i64: 8, 128>}, {transform_indices = @transform_5, window_bounds = array<i64: 8, 128>}]} {
    %c0 = arith.constant 0 : index
    %c0_0 = arith.constant 0 : index
    %0 = vector.load %arg1[%c0, %c0_0] : memref<1x128xf32, #tpu.memory_space<vmem>>, vector<1x128xf32>
    %c0_1 = arith.constant 0 : index
    %c0_2 = arith.constant 0 : index
    %1 = vector.load %arg2[%c0_1, %c0_2] : memref<8x128xf32, #tpu.memory_space<vmem>>, vector<8x128xf32>
    %c0_3 = arith.constant 0 : index
    %c0_4 = arith.constant 0 : index
    %2 = vector.load %arg3[%c0_3, %c0_4] : memref<8x128xf32, #tpu.memory_space<vmem>>, vector<8x128xf32>
    %c0_5 = arith.constant 0 : index
    %c0_6 = arith.constant 0 : index
    %3 = vector.load %arg5[%c0_5, %c0_6] : memref<8x128xf32, #tpu.memory_space<vmem>>, vector<8x128xf32>
    %4 = vector.broadcast %0 : vector<1x128xf32> to vector<8x128xf32>
    %5 = arith.mulf %1, %4 : vector<8x128xf32>
    %6 = arith.addf %5, %2 : vector<8x128xf32>
    %cst = arith.constant 0.000000e+00 : f32
    %7 = vector.broadcast %cst : f32 to vector<8x128xf32>
    %8 = arith.maximumf %6, %7 : vector<8x128xf32>
    %c0_7 = arith.constant 0 : index
    %c0_8 = arith.constant 0 : index
    %9 = vector.load %arg4[%c0_7, %c0_8] : memref<8x8xf32, #tpu.memory_space<vmem>>, vector<8x8xf32>
    %cst_9 = arith.constant dense<0.000000e+00> : vector<8x128xf32>
    %10 = tpu.matmul %9, %8, %cst_9 {dimension_numbers = #tpu.dot_dimension_numbers<[1], [0], [0], [1], [0, 0, 1, 1], [], []>, precision = #tpu.contract_precision<fp32>} : vector<8x8xf32>, vector<8x128xf32>, vector<8x128xf32> -> vector<8x128xf32>
    %11 = arith.addf %10, %3 : vector<8x128xf32>
    %cst_10 = arith.constant 0.000000e+00 : f32
    %12 = vector.broadcast %cst_10 : f32 to vector<8x128xf32>
    %13 = arith.maximumf %11, %12 : vector<8x128xf32>
    %c0_11 = arith.constant 0 : index
    %c0_12 = arith.constant 0 : index
    %14 = vector.load %arg6[%c0_11, %c0_12] : memref<8x128xf32, #tpu.memory_space<vmem>>, vector<8x128xf32>
    tpu.vector_store %arg6[%c0_11, %c0_12], %13 {strides = array<i32>} : memref<8x128xf32, #tpu.memory_space<vmem>>, vector<8x128xf32>,
    return
  }
  func.func @transform_0(%arg0: i32) -> (i32, i32) {
    %c0_i32 = arith.constant 0 : i32
    %c0_i32_0 = arith.constant 0 : i32
    return %c0_i32, %arg0 : i32, i32
  }
  func.func @transform_1(%arg0: i32) -> (i32, i32) {
    %c0_i32 = arith.constant 0 : i32
    %c0_i32_0 = arith.constant 0 : i32
    %c0_i32_1 = arith.constant 0 : i32
    return %c0_i32, %c0_i32_0 : i32, i32
  }
  func.func @transform_2(%arg0: i32) -> (i32, i32) {
    %c0_i32 = arith.constant 0 : i32
    %c0_i32_0 = arith.constant 0 : i32
    %c0_i32_1 = arith.constant 0 : i32
    return %c0_i32, %c0_i32_0 : i32, i32
  }
  func.func @transform_3(%arg0: i32) -> (i32, i32) {
    %c0_i32 = arith.constant 0 : i32
    %c0_i32_0 = arith.constant 0 : i32
    %c0_i32_1 = arith.constant 0 : i32
    return %c0_i32, %c0_i32_0 : i32, i32
  }
  func.func @transform_4(%arg0: i32) -> (i32, i32) {
    %c0_i32 = arith.constant 0 : i32
    %c0_i32_0 = arith.constant 0 : i32
    %c0_i32_1 = arith.constant 0 : i32
    return %c0_i32, %c0_i32_0 : i32, i32
  }
  func.func @transform_5(%arg0: i32) -> (i32, i32) {
    %c0_i32 = arith.constant 0 : i32
    %c0_i32_0 = arith.constant 0 : i32
    return %c0_i32, %arg0 : i32, i32
  }
}

</mosaic_0001>

<llo_original>
// kernel: tpu_custom_call.1
$region0: #{tpu_custom_call.1}
  #allocation0 [shape = 'u32[]', space=smem, size = 0x4, offset = 0x4, fixed_abs, tag = 'smem constant byte address 0x4 - core index']
  #allocation1 [shape = 'u32[72,128]{1,0:T(1,128)}', space=vmem, size = 0x9000, scoped, tag = 'internal scratch']
  %s0 = inlined_call_operand.hbm [shape: f32[1,8], index: 0, kind: input, shape index: {}]
  %s1 = inlined_call_operand.hbm [shape: f32[8,128], index: 1, kind: input, shape index: {}]
  %s2 = inlined_call_operand.hbm [shape: f32[8,128], index: 2, kind: input, shape index: {}]
  %s3 = inlined_call_operand.hbm [shape: f32[8,8], index: 3, kind: input, shape index: {}]
  %s4 = inlined_call_operand.hbm [shape: f32[8,128], index: 4, kind: input, shape index: {}]
  %s5 = inlined_call_operand.hbm [shape: f32[8,8], index: 5, kind: output, shape index: {}]
  %s6 = sld [smem:[#allocation0]]
  $region50: #{tpu_custom_call.1} parent=0
    _
  %s8 = ssub.s32 1, %s6
  %s9 = scalar_select 0, %s8, %s6
  $region1: #{tpu_custom_call.1} parent=0
    #allocation2 [shape = 'u8[512]{0}', space=vmem, size = 0x400, scoped, tag = 'input window, operand 0, single buffered']
    #allocation3 [shape = 's32[1]{0}', space=sflag, size = 0x4, scoped, tag = 'scoped memory for tpu_custom_call.1']
    #allocation4 [shape = 's32[1]{0}', space=sflag, size = 0x4, scoped, tag = 'scoped memory for tpu_custom_call.1']
    #allocation5 [shape = 'u8[4096]{0}', space=vmem, size = 0x1000, scoped, tag = 'input window, operand 1, single buffered']
    #allocation6 [shape = 's32[1]{0}', space=sflag, size = 0x4, scoped, tag = 'scoped memory for tpu_custom_call.1']
    #allocation7 [shape = 'u8[4096]{0}', space=vmem, size = 0x1000, scoped, tag = 'input window, operand 2, single buffered']
    #allocation8 [shape = 'u8[4096]{0}', space=vmem, size = 0x1000, scoped, tag = 'input window, operand 3, single buffered']
    #allocation9 [shape = 's32[1]{0}', space=sflag, size = 0x4, scoped, tag = 'scoped memory for tpu_custom_call.1']
    #allocation10 [shape = 'u8[4096]{0}', space=vmem, size = 0x1000, scoped, tag = 'input window, operand 4, single buffered']
    #allocation11 [shape = 'u8[4096]{0}', space=vmem, size = 0x1000, scoped, tag = 'output window, operand 0, single buffered']
    %10 = vsyncpa [#allocation3], 0
    %11 = vsyncpa [#allocation6], 0
    %12 = vsyncpa [#allocation9], 0
    %13 = vsyncpa [#allocation4], 0
    // Predicated region
    $region2: #{tpu_custom_call.1} parent=1 // pred_check
      _
    $region3: #{tpu_custom_call.1} parent=1 // pred_check_branch
      %15 = sbr.rel (0) target = $region5
    $region4: #{tpu_custom_call.1} parent=1 // pred_region
      %17 = vsyncadd [#allocation3], 0
      %s19 = sshll.u32 %s0, 4
      %s20 = int_to_ptr.hbm [resolvable:$true] %s19
      %s21 = sshll.u32 [#allocation2], 4
      %s22 = int_to_ptr.vmem [resolvable:$true] %s21
      %24 = dma.hbm_to_vmem [thread:$0]  %s20, 16, %s22, [#allocation3]
    $region5: #{tpu_custom_call.1} parent=1 // pred_fallthru
      _
    // Predicated region
    $region6: #{tpu_custom_call.1} parent=1 // pred_check
      _
    $region7: #{tpu_custom_call.1} parent=1 // pred_check_branch
      %26 = sbr.rel (0) target = $region9
    $region8: #{tpu_custom_call.1} parent=1 // pred_region
      %28 = vsyncadd [#allocation6], 0
      %s30 = sshll.u32 %s1, 4
      %s31 = int_to_ptr.hbm [resolvable:$true] %s30
      %s32 = sshll.u32 [#allocation5], 4
      %s33 = int_to_ptr.vmem [resolvable:$true] %s32
      %35 = dma.hbm_to_vmem [thread:$0]  %s31, 128, %s33, [#allocation6]
    $region9: #{tpu_custom_call.1} parent=1 // pred_fallthru
      _
    // Predicated region
    $region10: #{tpu_custom_call.1} parent=1 // pred_check
      _
    $region11: #{tpu_custom_call.1} parent=1 // pred_check_branch
      %37 = sbr.rel (0) target = $region13
    $region12: #{tpu_custom_call.1} parent=1 // pred_region
      %39 = vsyncadd [#allocation6], 0
      %s41 = sshll.u32 %s2, 4
      %s42 = int_to_ptr.hbm [resolvable:$true] %s41
      %s43 = sshll.u32 [#allocation7], 4
      %s44 = int_to_ptr.vmem [resolvable:$true] %s43
      %46 = dma.hbm_to_vmem [thread:$0]  %s42, 128, %s44, [#allocation6]
    $region13: #{tpu_custom_call.1} parent=1 // pred_fallthru
      _
    // Predicated region
    $region14: #{tpu_custom_call.1} parent=1 // pred_check
      _
    $region15: #{tpu_custom_call.1} parent=1 // pred_check_branch
      %48 = sbr.rel (0) target = $region17
    $region16: #{tpu_custom_call.1} parent=1 // pred_region
      %50 = vsyncadd [#allocation9], 0
      %s52 = sshll.u32 %s3, 4
      %s53 = int_to_ptr.hbm [resolvable:$true] %s52
      %s54 = sshll.u32 [#allocation8], 4
      %s55 = int_to_ptr.vmem [resolvable:$true] %s54
      %57 = dma.hbm_to_vmem [thread:$0]  %s53, 128, %s55, [#allocation9]
    $region17: #{tpu_custom_call.1} parent=1 // pred_fallthru
      _
    // Predicated region
    $region18: #{tpu_custom_call.1} parent=1 // pred_check
      _
    $region19: #{tpu_custom_call.1} parent=1 // pred_check_branch
      %59 = sbr.rel (0) target = $region21
    $region20: #{tpu_custom_call.1} parent=1 // pred_region
      %61 = vsyncadd [#allocation9], 0
      %s63 = sshll.u32 %s4, 4
      %s64 = int_to_ptr.hbm [resolvable:$true] %s63
      %s65 = sshll.u32 [#allocation10], 4
      %s66 = int_to_ptr.vmem [resolvable:$true] %s65
      %68 = dma.hbm_to_vmem [thread:$0]  %s64, 128, %s66, [#allocation9]
    $region21: #{tpu_custom_call.1} parent=1 // pred_fallthru
      _
    // Predicated region
    $region22: #{tpu_custom_call.1} parent=1 // pred_check
      _
    $region23: #{tpu_custom_call.1} parent=1 // pred_check_branch
      %70 = sbr.rel (0) target = $region25
    $region24: #{tpu_custom_call.1} parent=1 // pred_region
      %72 = dma.done [#allocation3], 16
    $region25: #{tpu_custom_call.1} parent=1 // pred_fallthru
      _
    // Predicated region
    $region26: #{tpu_custom_call.1} parent=1 // pred_check
      _
    $region27: #{tpu_custom_call.1} parent=1 // pred_check_branch
      %74 = sbr.rel (0) target = $region29
    $region28: #{tpu_custom_call.1} parent=1 // pred_region
      %76 = dma.done [#allocation6], 128
    $region29: #{tpu_custom_call.1} parent=1 // pred_fallthru
      _
    // Predicated region
    $region30: #{tpu_custom_call.1} parent=1 // pred_check
      _
    $region31: #{tpu_custom_call.1} parent=1 // pred_check_branch
      %78 = sbr.rel (0) target = $region33
    $region32: #{tpu_custom_call.1} parent=1 // pred_region
      %80 = dma.done [#allocation6], 128
    $region33: #{tpu_custom_call.1} parent=1 // pred_fallthru
      _
    // Predicated region
    $region34: #{tpu_custom_call.1} parent=1 // pred_check
      _
    $region35: #{tpu_custom_call.1} parent=1 // pred_check_branch
      %82 = sbr.rel (0) target = $region37
    $region36: #{tpu_custom_call.1} parent=1 // pred_region
      %84 = dma.done [#allocation9], 128
    $region37: #{tpu_custom_call.1} parent=1 // pred_fallthru
      _
    // Predicated region
    $region38: #{tpu_custom_call.1} parent=1 // pred_check
      _
    $region39: #{tpu_custom_call.1} parent=1 // pred_check_branch
      %86 = sbr.rel (0) target = $region41
    $region40: #{tpu_custom_call.1} parent=1 // pred_region
      %88 = dma.done [#allocation9], 128
    $region41: #{tpu_custom_call.1} parent=1 // pred_fallthru
      _
    %v89 = vld [vmem:[#allocation2] sm:$0x1]
    %v90 = vld [vmem:[#allocation5] sm:$0xff]
    %v91 = vld [vmem:[#allocation7] sm:$0xff]
    %v92 = vld [vmem:[#allocation10] sm:$0xff]
    %v94 = vperm.slane %v89, 0
    %v96 = vmul.f32 %v90, %v94
    %v97 = vadd.f32 %v96, %v91
    %v98 = vmax.f32 %v97, 0.0
    %v99 = vld [vmem:[#allocation8] sm:$0xff]
    %vm100 = vcmask 64512
    %v102 = vsel %vm100, %v99, 0
    %104 = vmatpush.msra.mxu0 0.0
    %105 = vmatpush.msra.mxu0 0.0
    %106 = vmatpush.msra.mxu0 0.0
    %107 = vmatpush.msra.mxu0 0.0
    %108 = vmatpush.msra.mxu0 0.0
    %109 = vmatpush.msra.mxu0 0.0
    %110 = vmatpush.msra.mxu0 0.0
    %111 = vmatpush.msra.mxu0 0.0
    %112 = vmatpush.msra.mxu0 0.0
    %113 = vmatpush.msra.mxu0 0.0
    %114 = vmatpush.msra.mxu0 0.0
    %115 = vmatpush.msra.mxu0 0.0
    %116 = vmatpush.msra.mxu0 0.0
    %117 = vmatpush.msra.mxu0 0.0
    %118 = vmatpush.msra.mxu0 0.0
    %v119 = vand.u32 %v98, 4294901760
    %120 = vmatpush.msra.mxu0 %v119
    %v121 = vand.u32 %v102, 4294901760
    %v122 = vsub.f32 %v102, %v121
    %v123 = vand.u32 %v122, 4294901760
    %v124 = vsub.f32 %v122, %v123
    %v125 = vand.u32 %v124, 4294901760
    %126 = vmatmul.f32.gmra.mxu0 %v125
    %v127 = vpop.f32.mrf.mxu0
    %v128 = vadd.f32 %v92, %v127
    %129 = vdwg.mxu0
    %130 = vmatpush.msra.mxu0 0.0
    %131 = vmatpush.msra.mxu0 0.0
    %132 = vmatpush.msra.mxu0 0.0
    %133 = vmatpush.msra.mxu0 0.0
    %134 = vmatpush.msra.mxu0 0.0
    %135 = vmatpush.msra.mxu0 0.0
    %136 = vmatpush.msra.mxu0 0.0
    %137 = vmatpush.msra.mxu0 0.0
    %138 = vmatpush.msra.mxu0 0.0
    %139 = vmatpush.msra.mxu0 0.0
    %140 = vmatpush.msra.mxu0 0.0
    %141 = vmatpush.msra.mxu0 0.0
    %142 = vmatpush.msra.mxu0 0.0
    %143 = vmatpush.msra.mxu0 0.0
    %144 = vmatpush.msra.mxu0 0.0
    %v145 = vand.u32 %v98, 4294901760
    %v146 = vsub.f32 %v98, %v145
    %v147 = vand.u32 %v146, 4294901760
    %v148 = vsub.f32 %v146, %v147
    %v149 = vand.u32 %v148, 4294901760
    %150 = vmatpush.msra.mxu0 %v149
    %v151 = vand.u32 %v102, 4294901760
    %152 = vmatmul.f32.gmra.mxu0 %v151
    %v153 = vpop.f32.mrf.mxu0
    %v154 = vadd.f32 %v128, %v153
    %155 = vdwg.mxu0
    %156 = vmatpush.msra.mxu0 0.0
    %157 = vmatpush.msra.mxu0 0.0
    %158 = vmatpush.msra.mxu0 0.0
    %159 = vmatpush.msra.mxu0 0.0
    %160 = vmatpush.msra.mxu0 0.0
    %161 = vmatpush.msra.mxu0 0.0
    %162 = vmatpush.msra.mxu0 0.0
    %163 = vmatpush.msra.mxu0 0.0
    %164 = vmatpush.msra.mxu0 0.0
    %165 = vmatpush.msra.mxu0 0.0
    %166 = vmatpush.msra.mxu0 0.0
    %167 = vmatpush.msra.mxu0 0.0
    %168 = vmatpush.msra.mxu0 0.0
    %169 = vmatpush.msra.mxu0 0.0
    %170 = vmatpush.msra.mxu0 0.0
    %v171 = vand.u32 %v98, 4294901760
    %v172 = vsub.f32 %v98, %v171
    %173 = vmatpush.msra.mxu0 %v172
    %v174 = vand.u32 %v102, 4294901760
    %v175 = vsub.f32 %v102, %v174
    %176 = vmatmul.f32.gmra.mxu0 %v175
    %v177 = vpop.f32.mrf.mxu0
    %v178 = vadd.f32 %v154, %v177
    %179 = vdwg.mxu0
    %180 = vmatpush.msra.mxu0 0.0
    %181 = vmatpush.msra.mxu0 0.0
    %182 = vmatpush.msra.mxu0 0.0
    %183 = vmatpush.msra.mxu0 0.0
    %184 = vmatpush.msra.mxu0 0.0
    %185 = vmatpush.msra.mxu0 0.0
    %186 = vmatpush.msra.mxu0 0.0
    %187 = vmatpush.msra.mxu0 0.0
    %188 = vmatpush.msra.mxu0 0.0
    %189 = vmatpush.msra.mxu0 0.0
    %190 = vmatpush.msra.mxu0 0.0
    %191 = vmatpush.msra.mxu0 0.0
    %192 = vmatpush.msra.mxu0 0.0
    %193 = vmatpush.msra.mxu0 0.0
    %194 = vmatpush.msra.mxu0 0.0
    %v195 = vand.u32 %v98, 4294901760
    %196 = vmatpush.msra.mxu0 %v195
    %v197 = vand.u32 %v102, 4294901760
    %v198 = vsub.f32 %v102, %v197
    %v199 = vand.u32 %v198, 4294901760
    %200 = vmatmul.f32.gmra.mxu0 %v199
    %v201 = vpop.f32.mrf.mxu0
    %v202 = vadd.f32 %v178, %v201
    %203 = vdwg.mxu0
    %204 = vmatpush.msra.mxu0 0.0
    %205 = vmatpush.msra.mxu0 0.0
    %206 = vmatpush.msra.mxu0 0.0
    %207 = vmatpush.msra.mxu0 0.0
    %208 = vmatpush.msra.mxu0 0.0
    %209 = vmatpush.msra.mxu0 0.0
    %210 = vmatpush.msra.mxu0 0.0
    %211 = vmatpush.msra.mxu0 0.0
    %212 = vmatpush.msra.mxu0 0.0
    %213 = vmatpush.msra.mxu0 0.0
    %214 = vmatpush.msra.mxu0 0.0
    %215 = vmatpush.msra.mxu0 0.0
    %216 = vmatpush.msra.mxu0 0.0
    %217 = vmatpush.msra.mxu0 0.0
    %218 = vmatpush.msra.mxu0 0.0
    %v219 = vand.u32 %v98, 4294901760
    %v220 = vsub.f32 %v98, %v219
    %v221 = vand.u32 %v220, 4294901760
    %222 = vmatpush.msra.mxu0 %v221
    %v223 = vand.u32 %v102, 4294901760
    %224 = vmatmul.f32.gmra.mxu0 %v223
    %v225 = vpop.f32.mrf.mxu0
    %v226 = vadd.f32 %v202, %v225
    %227 = vdwg.mxu0
    %228 = vmatpush.msra.mxu0 0.0
    %229 = vmatpush.msra.mxu0 0.0
    %230 = vmatpush.msra.mxu0 0.0
    %231 = vmatpush.msra.mxu0 0.0
    %232 = vmatpush.msra.mxu0 0.0
    %233 = vmatpush.msra.mxu0 0.0
    %234 = vmatpush.msra.mxu0 0.0
    %235 = vmatpush.msra.mxu0 0.0
    %236 = vmatpush.msra.mxu0 0.0
    %237 = vmatpush.msra.mxu0 0.0
    %238 = vmatpush.msra.mxu0 0.0
    %239 = vmatpush.msra.mxu0 0.0
    %240 = vmatpush.msra.mxu0 0.0
    %241 = vmatpush.msra.mxu0 0.0
    %242 = vmatpush.msra.mxu0 0.0
    %v243 = vand.u32 %v98, 4294901760
    %244 = vmatpush.msra.mxu0 %v243
    %v245 = vand.u32 %v102, 4294901760
    %246 = vmatmul.f32.gmra.mxu0 %v245
    %v247 = vpop.f32.mrf.mxu0
    %v248 = vadd.f32 %v226, %v247
    %249 = vdwg.mxu0
    %v250 = vmax.f32 %v248, 0.0
    %251 = vst [vmem:[#allocation11] sm:$0xff] %v250
    // Predicated region
    $region42: #{tpu_custom_call.1} parent=1 // pred_check
      _
    $region43: #{tpu_custom_call.1} parent=1 // pred_check_branch
      %253 = sbr.rel (0) target = $region45
    $region44: #{tpu_custom_call.1} parent=1 // pred_region
      %255 = vsyncadd [#allocation4], 0
      %s257 = sshll.u32 [#allocation11], 4
      %s258 = int_to_ptr.vmem [resolvable:$true] %s257
      %s259 = sshll.u32 %s5, 4
      %s260 = int_to_ptr.hbm [resolvable:$true] %s259
      %262 = dma.vmem_to_hbm [thread:$0]  %s258, 128, %s260, [#allocation4]
    $region45: #{tpu_custom_call.1} parent=1 // pred_fallthru
      _
    // Predicated region
    $region46: #{tpu_custom_call.1} parent=1 // pred_check
      _
    $region47: #{tpu_custom_call.1} parent=1 // pred_check_branch
      %264 = sbr.rel (0) target = $region49
    $region48: #{tpu_custom_call.1} parent=1 // pred_region
      %266 = dma.done [#allocation4], 128
    $region49: #{tpu_custom_call.1} parent=1 // pred_fallthru
      _
    %267 = vsyncpa [#allocation3], 1
    %268 = vsyncpa [#allocation6], 1
    %269 = vsyncpa [#allocation9], 1
    %270 = vsyncpa [#allocation4], 1

</llo_original>
